<compile_context>
chip_gen: v5e
topology: v5e:2x2
jax: 0.10.0
libtpu: 0.0.40
codegen_flags: <defaults>
</compile_context>

<pallas_src>
import functools

import jax
import jax.numpy as jnp
from jax.experimental import pallas as pl
from jax.experimental.pallas import tpu as pltpu


def _round_up(x, m):
    return ((x + m - 1) // m) * m


def _vmem_capacity_bytes():
    """Physical VMEM per TensorCore (128 MiB on v5e/v6e, 64 MiB on v7x)."""
    try:
        return int(pltpu.get_tpu_info().vmem_capacity_bytes)
    except Exception:
        return 64 << 20  # conservative fallback


_VMEM_HEADROOM = 8 << 20   # Mosaic internal scratch / metadata headroom
_VMEM_RESERVE = 4 << 20    # never let vmem_limit_bytes reach physical capacity


def _tile_vmem_bytes(tm, th, dim_p, itemsize):
    """Double-buffered per-step VMEM footprint of the kernel."""
    return (2 * tm * dim_p * itemsize          # x rows
            + 2 * dim_p * (2 * th) * itemsize  # fused [W_k | V_k]
            + 2 * th * dim_p * itemsize        # W2_k
            + 2 * tm * dim_p * itemsize        # out rows
            + tm * dim_p * 4)                  # f32 accumulator scratch


# ----------------------------------------------------------------------------
# Kernels
# ----------------------------------------------------------------------------

def _swiglu_kernel_single(x_ref, wv_ref, w2_ref, o_ref):
    """Whole hidden dim fits in one tile: no accumulator needed."""
    th = w2_ref.shape[0]
    ab = jnp.dot(x_ref[...], wv_ref[...], preferred_element_type=jnp.float32)
    a, b = ab[:, :th], ab[:, th:]
    h = (a * jax.nn.sigmoid(a)) * b                       # SiLU(xW) ⊙ xV (f32)
    o_ref[...] = jnp.dot(h.astype(w2_ref.dtype), w2_ref[...],
                         preferred_element_type=jnp.float32).astype(o_ref.dtype)


def _swiglu_kernel_multi(x_ref, wv_ref, w2_ref, o_ref, acc_ref, *, nk):
    """Reduce over nk hidden-dim tiles with an f32 VMEM accumulator."""
    k = pl.program_id(1)
    th = w2_ref.shape[0]

    ab = jnp.dot(x_ref[...], wv_ref[...], preferred_element_type=jnp.float32)
    a, b = ab[:, :th], ab[:, th:]
    h = (a * jax.nn.sigmoid(a)) * b                       # SiLU(xW) ⊙ xV (f32)
    part = jnp.dot(h.astype(w2_ref.dtype), w2_ref[...],
                   preferred_element_type=jnp.float32)

    @pl.when(k == 0)
    def _():
        acc_ref[...] = part

    @pl.when(jnp.logical_and(k > 0, k < nk - 1))
    def _():
        acc_ref[...] += part

    # Last step: fuse the final partial product into the output store
    # (saves one tm x dim_p f32 store + reload per row tile).
    @pl.when(k == nk - 1)
    def _():
        o_ref[...] = (acc_ref[...] + part).astype(o_ref.dtype)


# ----------------------------------------------------------------------------
# Parameter preparation (done ONCE, not per forward)
# ----------------------------------------------------------------------------

def make_swiglu_params(w_lin, v_lin, w2_lin, *, th=None, dtype=None):
    """Pre-transpose, pad, and fuse the nn.Linear weights.

    w_lin, v_lin : (h_dim, dim)   (nn.Linear layout, out x in)
    w2_lin       : (dim, h_dim)
    th           : hidden-dim tile (multiple of 128).  If None, chosen from the
                   detected VMEM capacity (1024 on 128 MiB chips, 512 on 64 MiB).
    dtype        : MXU operand dtype (bf16 recommended; f32 accepted).
    """
    h_dim, dim = w_lin.shape
    if dtype is None:
        dtype = w_lin.dtype

    dim_p = _round_up(dim, 128)
    if th is None:
        th = 1024 if _vmem_capacity_bytes() >= (96 << 20) else 512
    th = _round_up(min(th, _round_up(h_dim, 128)), 128)
    h_p = _round_up(h_dim, th)
    nk = h_p // th

    w = jnp.zeros((dim_p, h_p), dtype).at[:dim, :h_dim].set(w_lin.T.astype(dtype))
    v = jnp.zeros((dim_p, h_p), dtype).at[:dim, :h_dim].set(v_lin.T.astype(dtype))
    w2 = jnp.zeros((h_p, dim_p), dtype).at[:h_dim, :dim].set(w2_lin.T.astype(dtype))

    # Block k of `wv` holds [ W[:, k*th:(k+1)*th] | V[:, k*th:(k+1)*th] ].
    wv = jnp.concatenate(
        [w.reshape(dim_p, nk, th), v.reshape(dim_p, nk, th)], axis=2
    ).reshape(dim_p, nk * 2 * th)

    return dict(wv=wv, w2=w2, dim=dim, h_dim=h_dim,
                dim_p=dim_p, h_p=h_p, th=th, dtype=dtype)


# ----------------------------------------------------------------------------
# pallas_call wrapper
# ----------------------------------------------------------------------------

def swiglu_pallas(x2d, wv, w2, *, th, tm, vmem_cap=None):
    """x2d: [M_p, dim_p]  wv: [dim_p, 2*h_p] (tile-fused)  w2: [h_p, dim_p]."""
    M_p, dim_p = x2d.shape
    nk = wv.shape[1] // (2 * th)
    h_p = nk * th
    n_row = M_p // tm
    grid = (n_row, nk)

    isz = jnp.dtype(x2d.dtype).itemsize
    if vmem_cap is None:
        vmem_cap = _vmem_capacity_bytes()

    vmem_bytes = _tile_vmem_bytes(tm, th, dim_p, isz)
    # Exact footprint + fixed headroom, clamped below physical capacity.
    vmem_limit = int(min(vmem_bytes + _VMEM_HEADROOM, vmem_cap - _VMEM_RESERVE))

    cost = pl.CostEstimate(
        flops=int(6 * M_p * dim_p * h_p),
        transcendentals=int(M_p * h_p),
        # Weights are re-streamed once per row tile; x read once, out written once.
        bytes_accessed=int(2 * M_p * dim_p * isz
                           + n_row * (wv.size + w2.size) * isz),
    )

    if nk == 1:
        kernel = _swiglu_kernel_single
        scratch = []
    else:
        kernel = functools.partial(_swiglu_kernel_multi, nk=nk)
        scratch = [pltpu.VMEM((tm, dim_p), jnp.float32)]

    return pl.pallas_call(
        kernel,
        out_shape=jax.ShapeDtypeStruct((M_p, dim_p), x2d.dtype),
        grid_spec=pltpu.PrefetchScalarGridSpec(
            num_scalar_prefetch=0,
            grid=grid,
            in_specs=[
                pl.BlockSpec((tm, dim_p), lambda i, k: (i, 0)),      # x rows
                pl.BlockSpec((dim_p, 2 * th), lambda i, k: (0, k)),  # [W_k | V_k]
                pl.BlockSpec((th, dim_p), lambda i, k: (k, 0)),      # W2_k
            ],
            out_specs=pl.BlockSpec((tm, dim_p), lambda i, k: (i, 0)),
            scratch_shapes=scratch,
        ),
        compiler_params=pltpu.CompilerParams(
            dimension_semantics=("parallel", "arbitrary"),
            vmem_limit_bytes=vmem_limit),
        cost_estimate=cost,
    )(x2d, wv, w2)


def swiglu_forward(x, params, *, tm=None):
    """x: [..., dim].  params: output of make_swiglu_params."""
    dim, dim_p, dtype = params["dim"], params["dim_p"], params["dtype"]
    th = params["th"]
    lead = x.shape[:-1]
    x2d = x.reshape(-1, dim).astype(dtype)
    M = x2d.shape[0]

    isz = jnp.dtype(dtype).itemsize
    sub = 16 if isz < 4 else 8            # bf16 packs 16 sublanes / vreg, f32: 8

    vmem_cap = _vmem_capacity_bytes()
    budget = vmem_cap - _VMEM_HEADROOM - _VMEM_RESERVE

    # Row tile: generation-aware default, clamped to M and to the VMEM budget.
    if tm is None:
        tm = 1024 if vmem_cap >= (96 << 20) else 512
    tm = _round_up(max(sub, min(tm, _round_up(M, sub))), sub)
    # Prefer >= 2 row tiles for mid-sized M so both v7x TensorCores get work,
    # but never shrink below 512 rows (the weight-amortization knee).
    while tm > 512 and M > 512 and _round_up(M, tm) // tm < 2:
        tm = _round_up(tm // 2, sub)
    # Shrink tm if the double-buffered footprint would not fit in VMEM.
    while tm > sub and _tile_vmem_bytes(tm, th, dim_p, isz) > budget:
        tm = max(sub, _round_up(tm // 2, sub))

    M_p = _round_up(M, tm)

    # Skip the pad copy when the production shapes are already aligned.
    if M_p == M and dim_p == dim:
        x_in = x2d
    else:
        x_in = jnp.zeros((M_p, dim_p), dtype).at[:M, :dim].set(x2d)

    out = swiglu_pallas(x_in, params["wv"], params["w2"],
                        th=th, tm=tm, vmem_cap=vmem_cap)

    if M_p != M or dim_p != dim:
        out = out[:M, :dim]
    return out.reshape(*lead, dim).astype(x.dtype)


# ----------------------------------------------------------------------------
# Self-test
# ----------------------------------------------------------------------------

if __name__ == "__main__":
    batch, seq, dim, h_dim = 2, 8, 32, 64

    key = jax.random.PRNGKey(0)
    kx, kw, kv, kw2 = jax.random.split(key, 4)

    x = jax.random.normal(kx, (batch, seq, dim), dtype=jnp.float32)
    # nn.Linear weight shapes: w:(h_dim, dim), v:(h_dim, dim), w2:(dim, h_dim)
    w_lin = jax.random.normal(kw, (h_dim, dim), dtype=jnp.float32) * 0.05
    v_lin = jax.random.normal(kv, (h_dim, dim), dtype=jnp.float32) * 0.05
    w2_lin = jax.random.normal(kw2, (dim, h_dim), dtype=jnp.float32) * 0.05

    # pure-JAX reference
    a = x @ w_lin.T
    ref = (a * jax.nn.sigmoid(a) * (x @ v_lin.T)) @ w2_lin.T

    # f32 operand path.  (TPU f32 matmuls default to a reduced-precision MXU
    # pass with an f32 accumulator, so the tolerance is relaxed accordingly.)
    params_f32 = make_swiglu_params(w_lin, v_lin, w2_lin, dtype=jnp.float32)
    out = jax.block_until_ready(swiglu_forward(x, params_f32))
    assert out.shape == (batch, seq, dim)
    assert jnp.allclose(out, ref, atol=1e-2, rtol=1e-2), \
        float(jnp.max(jnp.abs(out - ref)))

    # bf16 operand path (intended fast path; f32 accumulation inside kernel).
    params_bf16 = make_swiglu_params(w_lin, v_lin, w2_lin, dtype=jnp.bfloat16)
    out_bf16 = jax.block_until_ready(
        swiglu_forward(x.astype(jnp.bfloat16), params_bf16))
    assert out_bf16.shape == (batch, seq, dim)
    assert float(jnp.max(jnp.abs(out_bf16.astype(jnp.float32) - ref))) < 5e-2

    print("KERNEL_OK")
</pallas_src>

<mosaic_0001>
module attributes {stable_mosaic.version = 11 : i64} {
  func.func @_swiglu_kernel_single(%arg0: i32, %arg1: i32, %arg2: memref<16x128xf32, #tpu.memory_space<vmem>>, %arg3: memref<128x256xf32, #tpu.memory_space<vmem>>, %arg4: memref<128x128xf32, #tpu.memory_space<vmem>>, %arg5: memref<16x128xf32, #tpu.memory_space<vmem>>) attributes {dimension_semantics = [#tpu.dimension_semantics<parallel>, #tpu.dimension_semantics<arbitrary>], iteration_bounds = array<i64: 1, 1>, scalar_prefetch = 0 : i64, scratch_operands = 0 : i64, tpu.core_type = #tpu.core_type<tc>, window_params = [{transform_indices = @transform_0, window_bounds = array<i64: 16, 128>}, {transform_indices = @transform_1, window_bounds = array<i64: 128, 256>}, {transform_indices = @transform_2, window_bounds = array<i64: 128, 128>}, {transform_indices = @transform_3, window_bounds = array<i64: 16, 128>}]} {
    %c0 = arith.constant 0 : index
    %c0_0 = arith.constant 0 : index
    %0 = vector.load %arg2[%c0, %c0_0] : memref<16x128xf32, #tpu.memory_space<vmem>>, vector<16x128xf32>
    %c0_1 = arith.constant 0 : index
    %c0_2 = arith.constant 0 : index
    %1 = vector.load %arg3[%c0_1, %c0_2] : memref<128x256xf32, #tpu.memory_space<vmem>>, vector<128x256xf32>
    %cst = arith.constant dense<0.000000e+00> : vector<16x256xf32>
    %2 = tpu.matmul %0, %1, %cst {dimension_numbers = #tpu.dot_dimension_numbers<[1], [0], [0], [1], [0, 0, 1, 1], [], []>} : vector<16x128xf32>, vector<128x256xf32>, vector<16x256xf32> -> vector<16x256xf32>
    %3 = vector.extract_strided_slice %2 {offsets = [0, 0], sizes = [16, 128], strides = [1, 1]} : vector<16x256xf32> to vector<16x128xf32>
    %4 = vector.extract_strided_slice %2 {offsets = [0, 128], sizes = [16, 128], strides = [1, 1]} : vector<16x256xf32> to vector<16x128xf32>
    %5 = arith.negf %3 : vector<16x128xf32>
    %6 = math.exp %5 : vector<16x128xf32>
    %cst_3 = arith.constant 1.000000e+00 : f32
    %7 = vector.broadcast %cst_3 : f32 to vector<16x128xf32>
    %8 = arith.addf %7, %6 : vector<16x128xf32>
    %9 = arith.divf %7, %8 : vector<16x128xf32>
    %10 = arith.mulf %3, %9 : vector<16x128xf32>
    %11 = arith.mulf %10, %4 : vector<16x128xf32>
    %c0_4 = arith.constant 0 : index
    %c0_5 = arith.constant 0 : index
    %12 = vector.load %arg4[%c0_4, %c0_5] : memref<128x128xf32, #tpu.memory_space<vmem>>, vector<128x128xf32>
    %cst_6 = arith.constant dense<0.000000e+00> : vector<16x128xf32>
    %13 = tpu.matmul %11, %12, %cst_6 {dimension_numbers = #tpu.dot_dimension_numbers<[1], [0], [0], [1], [0, 0, 1, 1], [], []>} : vector<16x128xf32>, vector<128x128xf32>, vector<16x128xf32> -> vector<16x128xf32>
    %c0_7 = arith.constant 0 : index
    %c0_8 = arith.constant 0 : index
    %14 = vector.load %arg5[%c0_7, %c0_8] : memref<16x128xf32, #tpu.memory_space<vmem>>, vector<16x128xf32>
    tpu.vector_store %arg5[%c0_7, %c0_8], %13 {strides = array<i32>} : memref<16x128xf32, #tpu.memory_space<vmem>>, vector<16x128xf32>,
    return
  }
  func.func @transform_0(%arg0: i32, %arg1: i32) -> (i32, i32) {
    %c0_i32 = arith.constant 0 : i32
    %c0_i32_0 = arith.constant 0 : i32
    return %arg0, %c0_i32 : i32, i32
  }
  func.func @transform_1(%arg0: i32, %arg1: i32) -> (i32, i32) {
    %c0_i32 = arith.constant 0 : i32
    %c0_i32_0 = arith.constant 0 : i32
    return %c0_i32, %arg1 : i32, i32
  }
  func.func @transform_2(%arg0: i32, %arg1: i32) -> (i32, i32) {
    %c0_i32 = arith.constant 0 : i32
    %c0_i32_0 = arith.constant 0 : i32
    return %arg1, %c0_i32 : i32, i32
  }
  func.func @transform_3(%arg0: i32, %arg1: i32) -> (i32, i32) {
    %c0_i32 = arith.constant 0 : i32
    %c0_i32_0 = arith.constant 0 : i32
    return %arg0, %c0_i32 : i32, i32
  }
}

</mosaic_0001>

<llo_original>
// kernel: tpu_custom_call.1
$region0: #{tpu_custom_call.1}
  #allocation0 [shape = 'u32[]', space=smem, size = 0x4, offset = 0x4, fixed_abs, tag = 'smem constant byte address 0x4 - core index']
  #allocation1 [shape = 'u32[72,128]{1,0:T(1,128)}', space=vmem, size = 0x9000, scoped, tag = 'internal scratch']
  %s0 = inlined_call_operand.hbm [shape: f32[16,128], index: 0, kind: input, shape index: {}]
  %s1 = inlined_call_operand.hbm [shape: f32[128,256], index: 1, kind: input, shape index: {}]
  %s2 = inlined_call_operand.hbm [shape: f32[128,128], index: 2, kind: input, shape index: {}]
  %s3 = inlined_call_operand.hbm [shape: f32[16,128], index: 3, kind: output, shape index: {}]
  %s4 = sld [smem:[#allocation0]]
  $region34: #{tpu_custom_call.1} parent=0
    _
  %s6 = ssub.s32 1, %s4
  %s7 = scalar_select 0, %s6, %s4
  $region1: #{tpu_custom_call.1} parent=0
    #allocation2 [shape = 'u8[8192]{0}', space=vmem, size = 0x2000, scoped, tag = 'input window, operand 0, single buffered']
    #allocation3 [shape = 's32[1]{0}', space=sflag, size = 0x4, scoped, tag = 'scoped memory for tpu_custom_call.1']
    #allocation4 [shape = 's32[1]{0}', space=sflag, size = 0x4, scoped, tag = 'scoped memory for tpu_custom_call.1']
    #allocation5 [shape = 'u8[131072]{0}', space=vmem, size = 0x20000, scoped, tag = 'input window, operand 1, single buffered']
    #allocation6 [shape = 's32[1]{0}', space=sflag, size = 0x4, scoped, tag = 'scoped memory for tpu_custom_call.1']
    #allocation7 [shape = 'u8[65536]{0}', space=vmem, size = 0x10000, scoped, tag = 'input window, operand 2, single buffered']
    #allocation8 [shape = 'u8[8192]{0}', space=vmem, size = 0x2000, scoped, tag = 'output window, operand 0, single buffered']
    %8 = vsyncpa [#allocation3], 0
    %9 = vsyncpa [#allocation6], 0
    %10 = vsyncpa [#allocation4], 0
    // Predicated region
    $region2: #{tpu_custom_call.1} parent=1 // pred_check
      _
    $region3: #{tpu_custom_call.1} parent=1 // pred_check_branch
      %12 = sbr.rel (0) target = $region5
    $region4: #{tpu_custom_call.1} parent=1 // pred_region
      %14 = vsyncadd [#allocation3], 0
      %s15 = sshll.u32 %s0, 4
      %s16 = int_to_ptr.hbm [resolvable:$true] %s15
      %s17 = sshll.u32 [#allocation2], 4
      %s18 = int_to_ptr.vmem [resolvable:$true] %s17
      %23 = dma.hbm_to_vmem [thread:$0]  %s16, 256, %s18, [#allocation3], 128, 128, 8
    $region5: #{tpu_custom_call.1} parent=1 // pred_fallthru
      _
    // Predicated region
    $region6: #{tpu_custom_call.1} parent=1 // pred_check
      _
    $region7: #{tpu_custom_call.1} parent=1 // pred_check_branch
      %25 = sbr.rel (0) target = $region9
    $region8: #{tpu_custom_call.1} parent=1 // pred_region
      %27 = vsyncadd [#allocation6], 0
      %s28 = sshll.u32 %s1, 4
      %s29 = int_to_ptr.hbm [resolvable:$true] %s28
      %s30 = sshll.u32 [#allocation5], 4
      %s31 = int_to_ptr.vmem [resolvable:$true] %s30
      %36 = dma.hbm_to_vmem [thread:$0]  %s29, 4096, %s31, [#allocation6], 256, 256, 16
    $region9: #{tpu_custom_call.1} parent=1 // pred_fallthru
      _
    // Predicated region
    $region10: #{tpu_custom_call.1} parent=1 // pred_check
      _
    $region11: #{tpu_custom_call.1} parent=1 // pred_check_branch
      %38 = sbr.rel (0) target = $region13
    $region12: #{tpu_custom_call.1} parent=1 // pred_region
      %40 = vsyncadd [#allocation6], 0
      %s41 = sshll.u32 %s2, 4
      %s42 = int_to_ptr.hbm [resolvable:$true] %s41
      %s43 = sshll.u32 [#allocation7], 4
      %s44 = int_to_ptr.vmem [resolvable:$true] %s43
      %49 = dma.hbm_to_vmem [thread:$0]  %s42, 2048, %s44, [#allocation6], 128, 128, 8
    $region13: #{tpu_custom_call.1} parent=1 // pred_fallthru
      _
    // Predicated region
    $region14: #{tpu_custom_call.1} parent=1 // pred_check
      _
    $region15: #{tpu_custom_call.1} parent=1 // pred_check_branch
      %51 = sbr.rel (0) target = $region17
    $region16: #{tpu_custom_call.1} parent=1 // pred_region
      %53 = dma.done [#allocation3], 256
    $region17: #{tpu_custom_call.1} parent=1 // pred_fallthru
      _
    // Predicated region
    $region18: #{tpu_custom_call.1} parent=1 // pred_check
      _
    $region19: #{tpu_custom_call.1} parent=1 // pred_check_branch
      %55 = sbr.rel (0) target = $region21
    $region20: #{tpu_custom_call.1} parent=1 // pred_region
      %57 = dma.done [#allocation6], 4096
    $region21: #{tpu_custom_call.1} parent=1 // pred_fallthru
      _
    // Predicated region
    $region22: #{tpu_custom_call.1} parent=1 // pred_check
      _
    $region23: #{tpu_custom_call.1} parent=1 // pred_check_branch
      %59 = sbr.rel (0) target = $region25
    $region24: #{tpu_custom_call.1} parent=1 // pred_region
      %61 = dma.done [#allocation6], 2048
    $region25: #{tpu_custom_call.1} parent=1 // pred_fallthru
      _
    %v62 = vld [vmem:[#allocation2] sm:$0xff]
    %v63 = vld [vmem:[#allocation2 + $0x8] sm:$0xff]
    %v64 = vld [vmem:[#allocation5] sm:$0xff]
    %v65 = vld [vmem:[#allocation5 + $0x8] sm:$0xff]
    %v66 = vld [vmem:[#allocation5 + $0x10] sm:$0xff]
    %v67 = vld [vmem:[#allocation5 + $0x18] sm:$0xff]
    %v68 = vld [vmem:[#allocation5 + $0x20] sm:$0xff]
    %v69 = vld [vmem:[#allocation5 + $0x28] sm:$0xff]
    %v70 = vld [vmem:[#allocation5 + $0x30] sm:$0xff]
    %v71 = vld [vmem:[#allocation5 + $0x38] sm:$0xff]
    %v72 = vld [vmem:[#allocation5 + $0x40] sm:$0xff]
    %v73 = vld [vmem:[#allocation5 + $0x48] sm:$0xff]
    %v74 = vld [vmem:[#allocation5 + $0x50] sm:$0xff]
    %v75 = vld [vmem:[#allocation5 + $0x58] sm:$0xff]
    %v76 = vld [vmem:[#allocation5 + $0x60] sm:$0xff]
    %v77 = vld [vmem:[#allocation5 + $0x68] sm:$0xff]
    %v78 = vld [vmem:[#allocation5 + $0x70] sm:$0xff]
    %v79 = vld [vmem:[#allocation5 + $0x78] sm:$0xff]
    %v80 = vld [vmem:[#allocation5 + $0x80] sm:$0xff]
    %v81 = vld [vmem:[#allocation5 + $0x88] sm:$0xff]
    %v82 = vld [vmem:[#allocation5 + $0x90] sm:$0xff]
    %v83 = vld [vmem:[#allocation5 + $0x98] sm:$0xff]
    %v84 = vld [vmem:[#allocation5 + $0xa0] sm:$0xff]
    %v85 = vld [vmem:[#allocation5 + $0xa8] sm:$0xff]
    %v86 = vld [vmem:[#allocation5 + $0xb0] sm:$0xff]
    %v87 = vld [vmem:[#allocation5 + $0xb8] sm:$0xff]
    %v88 = vld [vmem:[#allocation5 + $0xc0] sm:$0xff]
    %v89 = vld [vmem:[#allocation5 + $0xc8] sm:$0xff]
    %v90 = vld [vmem:[#allocation5 + $0xd0] sm:$0xff]
    %v91 = vld [vmem:[#allocation5 + $0xd8] sm:$0xff]
    %v92 = vld [vmem:[#allocation5 + $0xe0] sm:$0xff]
    %v93 = vld [vmem:[#allocation5 + $0xe8] sm:$0xff]
    %v94 = vld [vmem:[#allocation5 + $0xf0] sm:$0xff]
    %v95 = vld [vmem:[#allocation5 + $0xf8] sm:$0xff]
    %96 = vmatpush.msra.mxu0 %v94
    %97 = vmatpush.msra.mxu0 %v92
    %98 = vmatpush.msra.mxu0 %v90
    %99 = vmatpush.msra.mxu0 %v88
    %100 = vmatpush.msra.mxu0 %v86
    %101 = vmatpush.msra.mxu0 %v84
    %102 = vmatpush.msra.mxu0 %v82
    %103 = vmatpush.msra.mxu0 %v80
    %104 = vmatpush.msra.mxu0 %v78
    %105 = vmatpush.msra.mxu0 %v76
    %106 = vmatpush.msra.mxu0 %v74
    %107 = vmatpush.msra.mxu0 %v72
    %108 = vmatpush.msra.mxu0 %v70
    %109 = vmatpush.msra.mxu0 %v68
    %110 = vmatpush.msra.mxu0 %v66
    %111 = vmatpush.msra.mxu0 %v64
    %112 = vmatmul.f32.gmra.mxu0 %v62
    %v113 = vpop.f32.mrf.mxu0
    %v114 = vadd.f32 0.0, %v113
    %115 = vmatmul.f32.gmra.mxu0 %v63
    %v116 = vpop.f32.mrf.mxu0
    %v117 = vadd.f32 0.0, %v116
    %118 = vdwg.mxu0
    %119 = vmatpush.msra.mxu0 %v95
    %120 = vmatpush.msra.mxu0 %v93
    %121 = vmatpush.msra.mxu0 %v91
    %122 = vmatpush.msra.mxu0 %v89
    %123 = vmatpush.msra.mxu0 %v87
    %124 = vmatpush.msra.mxu0 %v85
    %125 = vmatpush.msra.mxu0 %v83
    %126 = vmatpush.msra.mxu0 %v81
    %127 = vmatpush.msra.mxu0 %v79
    %128 = vmatpush.msra.mxu0 %v77
    %129 = vmatpush.msra.mxu0 %v75
    %130 = vmatpush.msra.mxu0 %v73
    %131 = vmatpush.msra.mxu0 %v71
    %132 = vmatpush.msra.mxu0 %v69
    %133 = vmatpush.msra.mxu0 %v67
    %134 = vmatpush.msra.mxu0 %v65
    %135 = vmatmul.f32.gmra.mxu0 %v62
    %v136 = vpop.f32.mrf.mxu0
    %v137 = vadd.f32 0.0, %v136
    %138 = vmatmul.f32.gmra.mxu0 %v63
    %v139 = vpop.f32.mrf.mxu0
    %v140 = vadd.f32 0.0, %v139
    %141 = vdwg.mxu0
    %v142 = vxor.u32 %v114, 2147483648
    %v143 = vxor.u32 %v117, 2147483648
    %v144 = vmul.f32 %v142, 1.442695
    %v145 = vpow.pop %v144
    %v146 = vmul.f32 %v143, 1.442695
    %v147 = vpow.pop %v146
    %v148 = vadd.f32 %v145, 1.0
    %v149 = vadd.f32 %v147, 1.0
    %v150 = vrcp.pop %v148
    %v151 = vmul.f32 %v148, %v150
    %v152 = vsub.f32 1.0, %v151
    %v153 = vmul.f32 %v150, %v152
    %v154 = vadd.f32 %v150, %v153
    %vm155 = vweird.f32 %v148
    %vm156 = vweird.f32 %v150
    %vm157 = vmor %vm155, %vm156
    %v158 = vsel %vm157, %v150, %v154
    %v159 = vand.u32 2147483647, %v148
    %vm160 = vcmp.eq.f32.partialorder %v159, 8.507059e+37
    %v161 = vand.u32 %v148, 2147483648
    %v162 = vor.u32 1.1754944e-38, %v161
    %v163 = vsel %vm160, %v162, %v158
    %v164 = vmul.f32 1.0, %v163
    %v165 = vrcp.pop %v149
    %v166 = vmul.f32 %v149, %v165
    %v167 = vsub.f32 1.0, %v166
    %v168 = vmul.f32 %v165, %v167
    %v169 = vadd.f32 %v165, %v168
    %vm170 = vweird.f32 %v149
    %vm171 = vweird.f32 %v165
    %vm172 = vmor %vm170, %vm171
    %v173 = vsel %vm172, %v165, %v169
    %v174 = vand.u32 2147483647, %v149
    %vm175 = vcmp.eq.f32.partialorder %v174, 8.507059e+37
    %v176 = vand.u32 %v149, 2147483648
    %v177 = vor.u32 1.1754944e-38, %v176
    %v178 = vsel %vm175, %v177, %v173
    %v179 = vmul.f32 1.0, %v178
    %v180 = vmul.f32 %v114, %v164
    %v181 = vmul.f32 %v117, %v179
    %v182 = vmul.f32 %v180, %v137
    %v183 = vmul.f32 %v181, %v140
    %v184 = vld [vmem:[#allocation7] sm:$0xff]
    %v185 = vld [vmem:[#allocation7 + $0x8] sm:$0xff]
    %v186 = vld [vmem:[#allocation7 + $0x10] sm:$0xff]
    %v187 = vld [vmem:[#allocation7 + $0x18] sm:$0xff]
    %v188 = vld [vmem:[#allocation7 + $0x20] sm:$0xff]
    %v189 = vld [vmem:[#allocation7 + $0x28] sm:$0xff]
    %v190 = vld [vmem:[#allocation7 + $0x30] sm:$0xff]
    %v191 = vld [vmem:[#allocation7 + $0x38] sm:$0xff]
    %v192 = vld [vmem:[#allocation7 + $0x40] sm:$0xff]
    %v193 = vld [vmem:[#allocation7 + $0x48] sm:$0xff]
    %v194 = vld [vmem:[#allocation7 + $0x50] sm:$0xff]
    %v195 = vld [vmem:[#allocation7 + $0x58] sm:$0xff]
    %v196 = vld [vmem:[#allocation7 + $0x60] sm:$0xff]
    %v197 = vld [vmem:[#allocation7 + $0x68] sm:$0xff]
    %v198 = vld [vmem:[#allocation7 + $0x70] sm:$0xff]
    %v199 = vld [vmem:[#allocation7 + $0x78] sm:$0xff]
    %200 = vmatpush.msra.mxu0 %v199
    %201 = vmatpush.msra.mxu0 %v198
    %202 = vmatpush.msra.mxu0 %v197
    %203 = vmatpush.msra.mxu0 %v196
    %204 = vmatpush.msra.mxu0 %v195
    %205 = vmatpush.msra.mxu0 %v194
    %206 = vmatpush.msra.mxu0 %v193
    %207 = vmatpush.msra.mxu0 %v192
    %208 = vmatpush.msra.mxu0 %v191
    %209 = vmatpush.msra.mxu0 %v190
    %210 = vmatpush.msra.mxu0 %v189
    %211 = vmatpush.msra.mxu0 %v188
    %212 = vmatpush.msra.mxu0 %v187
    %213 = vmatpush.msra.mxu0 %v186
    %214 = vmatpush.msra.mxu0 %v185
    %215 = vmatpush.msra.mxu0 %v184
    %216 = vmatmul.f32.gmra.mxu0 %v182
    %v217 = vpop.f32.mrf.mxu0
    %v218 = vadd.f32 0.0, %v217
    %219 = vmatmul.f32.gmra.mxu0 %v183
    %v220 = vpop.f32.mrf.mxu0
    %v221 = vadd.f32 0.0, %v220
    %222 = vdwg.mxu0
    %223 = vst [vmem:[#allocation8] sm:$0xff] %v218
    %224 = vst [vmem:[#allocation8 + $0x8] sm:$0xff] %v221
    // Predicated region
    $region26: #{tpu_custom_call.1} parent=1 // pred_check
      _
    $region27: #{tpu_custom_call.1} parent=1 // pred_check_branch
      %226 = sbr.rel (0) target = $region29
    $region28: #{tpu_custom_call.1} parent=1 // pred_region
      %228 = vsyncadd [#allocation4], 0
      %s229 = sshll.u32 [#allocation8], 4
      %s230 = int_to_ptr.vmem [resolvable:$true] %s229
      %s231 = sshll.u32 %s3, 4
      %s232 = int_to_ptr.hbm [resolvable:$true] %s231
      %237 = dma.vmem_to_hbm [thread:$0]  %s230, 256, %s232, [#allocation4], 128, 128, 8
    $region29: #{tpu_custom_call.1} parent=1 // pred_fallthru
      _
    // Predicated region
    $region30: #{tpu_custom_call.1} parent=1 // pred_check
      _
    $region31: #{tpu_custom_call.1} parent=1 // pred_check_branch
      %239 = sbr.rel (0) target = $region33
    $region32: #{tpu_custom_call.1} parent=1 // pred_region
      %241 = dma.done [#allocation4], 256
    $region33: #{tpu_custom_call.1} parent=1 // pred_fallthru
      _
    %242 = vsyncpa [#allocation3], 1
    %243 = vsyncpa [#allocation6], 1
    %244 = vsyncpa [#allocation4], 1

</llo_original>
